<compile_context>
chip_gen: v5e
topology: v5e:2x2
jax: 0.10.0
libtpu: 0.0.40
codegen_flags: <defaults>
</compile_context>

<pallas_src>
import jax
import jax.numpy as jnp
from jax import lax
from jax.experimental import pallas as pl
from jax.experimental.pallas import tpu as pltpu

_HALF_LOG_2PI = 0.5 * float(jnp.log(2.0 * jnp.pi))
_LANE = 128
_SUBLANE = 8


def _round_up(x, m):
    return ((x + m - 1) // m) * m


def _nll_elem(mu, sigma, target):
    """Per-element -log N(target; mu, sigma) WITHOUT the 0.5*log(2*pi) constant."""
    mu = mu.astype(jnp.float32)
    sigma = sigma.astype(jnp.float32)
    x = target.astype(jnp.float32)
    z = (x - mu) / sigma
    return 0.5 * (z * z) + jnp.log(sigma)


def _make_kernel(tile_rows, chunk_rows, m_rows, num_blocks):
    """Build the per-block kernel with all sizes baked in as static ints."""
    n_chunks_full = tile_rows // chunk_rows
    last_valid = m_rows - (num_blocks - 1) * tile_rows   # valid rows in last block
    ragged = last_valid != tile_rows
    n_chunks_last = pl.cdiv(last_valid, chunk_rows)
    unroll_full = max(1, min(8, n_chunks_full))
    unroll_last = max(1, min(8, n_chunks_last))

    def kernel(mu_ref, sg_ref, tg_ref, part_ref):
        zeros = jnp.zeros((_SUBLANE, _LANE), jnp.float32)

        def chunk_val(k):
            sl = pl.ds(k * chunk_rows, chunk_rows)
            return _nll_elem(mu_ref[sl, :], sg_ref[sl, :], tg_ref[sl, :])

        def body_full(k, acc):
            v = chunk_val(k)
            # (chunk, 128) -> (chunk/8, 8, 128): layout-trivial; summing axis 0
            # is pure VPU vreg accumulation (no cross-lane/sublane XLU work).
            return acc + jnp.sum(v.reshape(-1, _SUBLANE, _LANE), axis=0)

        def body_masked(k, acc):
            v = chunk_val(k)
            row = (lax.broadcasted_iota(jnp.int32, (chunk_rows, _LANE), 0)
                   + k * chunk_rows)
            # Select (not multiply) so inf/nan from garbage rows never reaches
            # the sum.
            v = jnp.where(row < last_valid, v, 0.0)
            return acc + jnp.sum(v.reshape(-1, _SUBLANE, _LANE), axis=0)

        if not ragged:
            part_ref[...] = lax.fori_loop(0, n_chunks_full, body_full, zeros,
                                          unroll=unroll_full)
        else:
            is_last = pl.program_id(0) == num_blocks - 1

            @pl.when(jnp.logical_not(is_last))
            def _():
                part_ref[...] = lax.fori_loop(0, n_chunks_full, body_full, zeros,
                                              unroll=unroll_full)

            @pl.when(is_last)
            def _():
                part_ref[...] = lax.fori_loop(0, n_chunks_last, body_masked, zeros,
                                              unroll=unroll_last)

    return kernel


def negative_log_likelihood(mu, sigma, target, *,
                            max_tile_rows=8192,
                            chunk_rows=256,
                            small_threshold=64 * 1024):
    """Pallas equivalent of  -Normal(mu, sigma).log_prob(target).sum()  (forward)."""
    assert mu.shape == sigma.shape == target.shape
    n_elem = int(target.size)
    const = jnp.float32(n_elem * _HALF_LOG_2PI)

    m_rows = n_elem // _LANE          # full lane-rows processed by the kernel
    rem = n_elem - m_rows * _LANE     # sub-128 tail handled in plain jnp

    # Small inputs: XLA's fused elementwise+reduce beats pallas_call fixed cost.
    if n_elem <= small_threshold or m_rows < _SUBLANE:
        return jnp.sum(_nll_elem(mu, sigma, target)) + const

    mu_f = mu.reshape(-1)
    sg_f = sigma.reshape(-1)
    tg_f = target.reshape(-1)

    tail = jnp.float32(0.0)
    if rem:
        # TODO(synk): when n_elem is not 128-aligned, the prefix slice below costs
        # one extra copy of ~n_elem per input; the <128-element tail is negligible.
        tail = jnp.sum(_nll_elem(mu_f[m_rows * _LANE:],
                                 sg_f[m_rows * _LANE:],
                                 tg_f[m_rows * _LANE:]))
        mu_f = mu_f[: m_rows * _LANE]
        sg_f = sg_f[: m_rows * _LANE]
        tg_f = tg_f[: m_rows * _LANE]

    mu2 = mu_f.reshape(m_rows, _LANE)   # free reshape: contiguous, lane-dense
    sg2 = sg_f.reshape(m_rows, _LANE)
    tg2 = tg_f.reshape(m_rows, _LANE)

    # Tile sizing: as large as VMEM comfortably allows, but keep >= 4 blocks so
    # v7x's two TensorCores both get work and the pipeline has overlap.
    tile_rows = min(int(max_tile_rows), _round_up(pl.cdiv(m_rows, 4), _SUBLANE))
    tile_rows = max(tile_rows, _SUBLANE)
    chunk = max(_SUBLANE, min(int(chunk_rows), tile_rows))
    chunk = _round_up(chunk, _SUBLANE)
    tile_rows = _round_up(tile_rows, chunk)        # tile is a multiple of chunk
    num_blocks = pl.cdiv(m_rows, tile_rows)

    in_spec = pl.BlockSpec((tile_rows, _LANE), lambda i: (i, 0))
    out_spec = pl.BlockSpec((_SUBLANE, _LANE), lambda i: (i, 0))

    partials = pl.pallas_call(
        _make_kernel(tile_rows, chunk, m_rows, num_blocks),
        out_shape=jax.ShapeDtypeStruct((num_blocks * _SUBLANE, _LANE), jnp.float32),
        grid_spec=pltpu.PrefetchScalarGridSpec(
            num_scalar_prefetch=0,
            grid=(num_blocks,),
            in_specs=[in_spec, in_spec, in_spec],
            out_specs=out_spec,
        ),
        compiler_params=pltpu.CompilerParams(
            dimension_semantics=("parallel",),
            # Explicit limit is required on v5e (16 MiB scoped default):
            # 3 inputs x 2 pipeline buffers x 4 MiB (f32 @ 8192 rows) = 24 MiB.
            vmem_limit_bytes=32 << 20,
        ),
    )(mu2, sg2, tg2)

    # Single cross-lane/sublane reduce, done once, outside the kernel.
    return jnp.sum(partials) + tail + const


if __name__ == "__main__":
    def make_inputs(shape, key):
        k_mu, k_sig, k_tgt = jax.random.split(key, 3)
        mu = jax.random.normal(k_mu, shape, dtype=jnp.float32)
        sigma = jax.nn.softplus(jax.random.normal(k_sig, shape, dtype=jnp.float32)) + 0.1
        target = jax.random.normal(k_tgt, shape, dtype=jnp.float32)
        return mu, sigma, target

    def ref_nll(mu, sigma, target):
        z = (target - mu) / sigma
        return jnp.sum(0.5 * z * z + jnp.log(sigma) + 0.5 * jnp.log(2.0 * jnp.pi))

    key = jax.random.PRNGKey(0)
    k1, k2, k3 = jax.random.split(key, 3)

    # 1) Small NCHW batch (torchhydro-typical loss size) -> fused-jnp fallback.
    mu, sg, tg = make_inputs((2, 4, 16, 16), k1)            # 2048 elems
    out = jax.block_until_ready(negative_log_likelihood(mu, sg, tg))
    assert jnp.allclose(out, ref_nll(mu, sg, tg), rtol=1e-5, atol=1e-3), "fallback path"

    # 2) Force the Pallas path on a shape with a ragged last block AND a
    #    sub-128 tail: n_elem = 6336 -> 49 lane-rows (4 blocks of 16) + 64 tail.
    mu, sg, tg = make_inputs((2, 4, 24, 33), k2)
    out = jax.block_until_ready(
        negative_log_likelihood(mu, sg, tg, small_threshold=0, max_tile_rows=16))
    assert jnp.allclose(out, ref_nll(mu, sg, tg), rtol=1e-4, atol=1e-2), "ragged pallas"

    # 3) Default-config Pallas path (128-aligned, multiple full blocks).
    mu, sg, tg = make_inputs((4, 8, 64, 64), k3)            # 131072 elems
    out = jax.block_until_ready(negative_log_likelihood(mu, sg, tg))
    assert jnp.allclose(out, ref_nll(mu, sg, tg), rtol=1e-4, atol=5e-1), "aligned pallas"

    print("KERNEL_OK")
</pallas_src>

<mosaic_0001>
module attributes {stable_mosaic.version = 11 : i64} {
  func.func @kernel(%arg0: i32, %arg1: memref<16x128xf32, #tpu.memory_space<vmem>>, %arg2: memref<16x128xf32, #tpu.memory_space<vmem>>, %arg3: memref<16x128xf32, #tpu.memory_space<vmem>>, %arg4: memref<8x128xf32, #tpu.memory_space<vmem>>) attributes {dimension_semantics = [#tpu.dimension_semantics<parallel>], iteration_bounds = array<i64: 4>, scalar_prefetch = 0 : i64, scratch_operands = 0 : i64, tpu.core_type = #tpu.core_type<tc>, window_params = [{transform_indices = @transform_0, window_bounds = array<i64: 16, 128>}, {transform_indices = @transform_1, window_bounds = array<i64: 16, 128>}, {transform_indices = @transform_2, window_bounds = array<i64: 16, 128>}, {transform_indices = @transform_3, window_bounds = array<i64: 8, 128>}]} {
    %cst = arith.constant 0.000000e+00 : f32
    %0 = vector.broadcast %cst : f32 to vector<8x128xf32>
    %c3_i32 = arith.constant 3 : i32
    %1 = arith.cmpi eq, %arg0, %c3_i32 : i32
    %true = arith.constant true
    %2 = arith.xori %1, %true : i1
    %3 = arith.extui %2 : i1 to i32
    %c0_i32 = arith.constant 0 : i32
    %4 = arith.cmpi ne, %3, %c0_i32 : i32
    scf.if %4 {
      %c0_i32_1 = arith.constant 0 : i32
      %c16_i32 = arith.constant 16 : i32
      %7 = arith.muli %c0_i32_1, %c16_i32 : i32
      %8 = arith.index_cast %7 : i32 to index
      %c0 = arith.constant 0 : index
      %9 = vector.load %arg1[%8, %c0] : memref<16x128xf32, #tpu.memory_space<vmem>>, vector<16x128xf32>
      %10 = arith.index_cast %7 : i32 to index
      %c0_2 = arith.constant 0 : index
      %11 = vector.load %arg2[%10, %c0_2] : memref<16x128xf32, #tpu.memory_space<vmem>>, vector<16x128xf32>
      %12 = arith.index_cast %7 : i32 to index
      %c0_3 = arith.constant 0 : index
      %13 = vector.load %arg3[%12, %c0_3] : memref<16x128xf32, #tpu.memory_space<vmem>>, vector<16x128xf32>
      %14 = arith.subf %13, %9 : vector<16x128xf32>
      %15 = arith.divf %14, %11 : vector<16x128xf32>
      %16 = arith.mulf %15, %15 : vector<16x128xf32>
      %cst_4 = arith.constant 5.000000e-01 : f32
      %17 = vector.broadcast %cst_4 : f32 to vector<16x128xf32>
      %18 = arith.mulf %17, %16 : vector<16x128xf32>
      %19 = math.log %11 : vector<16x128xf32>
      %20 = arith.addf %18, %19 : vector<16x128xf32>
      %21 = vector.shape_cast %20 : vector<16x128xf32> to vector<2x8x128xf32>
      %cst_5 = arith.constant dense<0.000000e+00> : vector<8x128xf32>
      %22 = vector.multi_reduction <add>, %21, %cst_5 [0] : vector<2x8x128xf32> to vector<8x128xf32>
      %23 = arith.addf %0, %22 : vector<8x128xf32>
      %c1_i32 = arith.constant 1 : i32
      %c0_6 = arith.constant 0 : index
      %c0_7 = arith.constant 0 : index
      %24 = vector.load %arg4[%c0_6, %c0_7] : memref<8x128xf32, #tpu.memory_space<vmem>>, vector<8x128xf32>
      tpu.vector_store %arg4[%c0_6, %c0_7], %23 {strides = array<i32>} : memref<8x128xf32, #tpu.memory_space<vmem>>, vector<8x128xf32>,
    } else {
    }
    %5 = arith.extui %1 : i1 to i32
    %c0_i32_0 = arith.constant 0 : i32
    %6 = arith.cmpi ne, %5, %c0_i32_0 : i32
    scf.if %6 {
      %c0_i32_1 = arith.constant 0 : i32
      %c16_i32 = arith.constant 16 : i32
      %7 = arith.muli %c0_i32_1, %c16_i32 : i32
      %8 = arith.index_cast %7 : i32 to index
      %c0 = arith.constant 0 : index
      %9 = vector.load %arg1[%8, %c0] : memref<16x128xf32, #tpu.memory_space<vmem>>, vector<16x128xf32>
      %10 = arith.index_cast %7 : i32 to index
      %c0_2 = arith.constant 0 : index
      %11 = vector.load %arg2[%10, %c0_2] : memref<16x128xf32, #tpu.memory_space<vmem>>, vector<16x128xf32>
      %12 = arith.index_cast %7 : i32 to index
      %c0_3 = arith.constant 0 : index
      %13 = vector.load %arg3[%12, %c0_3] : memref<16x128xf32, #tpu.memory_space<vmem>>, vector<16x128xf32>
      %14 = arith.subf %13, %9 : vector<16x128xf32>
      %15 = arith.divf %14, %11 : vector<16x128xf32>
      %16 = arith.mulf %15, %15 : vector<16x128xf32>
      %cst_4 = arith.constant 5.000000e-01 : f32
      %17 = vector.broadcast %cst_4 : f32 to vector<16x128xf32>
      %18 = arith.mulf %17, %16 : vector<16x128xf32>
      %19 = math.log %11 : vector<16x128xf32>
      %20 = arith.addf %18, %19 : vector<16x128xf32>
      %21 = tpu.iota {dimensions = array<i32: 0>} : vector<16x128xi32>
      %c16_i32_5 = arith.constant 16 : i32
      %22 = arith.muli %c0_i32_1, %c16_i32_5 : i32
      %23 = vector.broadcast %22 : i32 to vector<16x128xi32>
      %24 = arith.addi %21, %23 : vector<16x128xi32>
      %c1_i32 = arith.constant 1 : i32
      %25 = vector.broadcast %c1_i32 : i32 to vector<16x128xi32>
      %26 = arith.cmpi slt, %24, %25 : vector<16x128xi32>
      %cst_6 = arith.constant 0.000000e+00 : f32
      %27 = vector.broadcast %cst_6 : f32 to vector<16x128xf32>
      %28 = arith.select %26, %20, %27 : vector<16x128xi1>, vector<16x128xf32>
      %29 = vector.shape_cast %28 : vector<16x128xf32> to vector<2x8x128xf32>
      %cst_7 = arith.constant dense<0.000000e+00> : vector<8x128xf32>
      %30 = vector.multi_reduction <add>, %29, %cst_7 [0] : vector<2x8x128xf32> to vector<8x128xf32>
      %31 = arith.addf %0, %30 : vector<8x128xf32>
      %c1_i32_8 = arith.constant 1 : i32
      %c0_9 = arith.constant 0 : index
      %c0_10 = arith.constant 0 : index
      %32 = vector.load %arg4[%c0_9, %c0_10] : memref<8x128xf32, #tpu.memory_space<vmem>>, vector<8x128xf32>
      tpu.vector_store %arg4[%c0_9, %c0_10], %31 {strides = array<i32>} : memref<8x128xf32, #tpu.memory_space<vmem>>, vector<8x128xf32>,
    } else {
    }
    return
  }
  func.func @transform_0(%arg0: i32) -> (i32, i32) {
    %c0_i32 = arith.constant 0 : i32
    %c0_i32_0 = arith.constant 0 : i32
    return %arg0, %c0_i32 : i32, i32
  }
  func.func @transform_1(%arg0: i32) -> (i32, i32) {
    %c0_i32 = arith.constant 0 : i32
    %c0_i32_0 = arith.constant 0 : i32
    return %arg0, %c0_i32 : i32, i32
  }
  func.func @transform_2(%arg0: i32) -> (i32, i32) {
    %c0_i32 = arith.constant 0 : i32
    %c0_i32_0 = arith.constant 0 : i32
    return %arg0, %c0_i32 : i32, i32
  }
  func.func @transform_3(%arg0: i32) -> (i32, i32) {
    %c0_i32 = arith.constant 0 : i32
    %c0_i32_0 = arith.constant 0 : i32
    return %arg0, %c0_i32 : i32, i32
  }
}

</mosaic_0001>

<llo_original>
// kernel: tpu_custom_call.1
$region0: #{tpu_custom_call.1}
  #allocation0 [shape = 'u32[]', space=smem, size = 0x4, offset = 0x4, fixed_abs, tag = 'smem constant byte address 0x4 - core index']
  #allocation1 [shape = 'u32[72,128]{1,0:T(1,128)}', space=vmem, size = 0x9000, scoped, tag = 'internal scratch']
  %s0 = inlined_call_operand.hbm [shape: f32[49,128], index: 0, kind: input, shape index: {}]
  %s1 = inlined_call_operand.hbm [shape: f32[49,128], index: 1, kind: input, shape index: {}]
  %s2 = inlined_call_operand.hbm [shape: f32[49,128], index: 2, kind: input, shape index: {}]
  %s3 = inlined_call_operand.hbm [shape: f32[32,128], index: 3, kind: output, shape index: {}]
  %s4 = sld [smem:[#allocation0]]
  $region65: #{tpu_custom_call.1} parent=0
    _
  %s6 = ssub.s32 1, %s4
  %s7 = scalar_select 0, %s6, %s4
  $region1: #{tpu_custom_call.1} parent=0
    #allocation2 [shape = 'u8[16384]{0}', space=vmem, size = 0x4000, scoped, tag = 'input window, operand 0']
    #allocation3 [shape = 's32[2]{0}', space=sflag, size = 0x8, scoped, tag = 'scoped memory for tpu_custom_call.1']
    #allocation4 [shape = 's32[2]{0}', space=sflag, size = 0x8, scoped, tag = 'scoped memory for tpu_custom_call.1']
    #allocation5 [shape = 'u8[16384]{0}', space=vmem, size = 0x4000, scoped, tag = 'input window, operand 1']
    #allocation6 [shape = 's32[2]{0}', space=sflag, size = 0x8, scoped, tag = 'scoped memory for tpu_custom_call.1']
    #allocation7 [shape = 'u8[16384]{0}', space=vmem, size = 0x4000, scoped, tag = 'input window, operand 2']
    #allocation8 [shape = 'u8[8192]{0}', space=vmem, size = 0x2000, scoped, tag = 'output window, operand 0']
    %8 = vsyncpa [#allocation3], 0
    %s9 = scalar_lea.sflag [#allocation3], 1
    %10 = vsyncpa %s9, 0
    %11 = vsyncpa [#allocation6], 0
    %s12 = scalar_lea.sflag [#allocation6], 1
    %13 = vsyncpa %s12, 0
    %14 = vsyncpa [#allocation4], 0
    %s15 = scalar_lea.sflag [#allocation4], 1
    %16 = vsyncpa %s15, 0
    loop: start=0, step=1, limit=6
    $region2: #{tpu_custom_call.1} parent=1 // loop_pre_header
      _
    $region3: #{tpu_custom_call.1} parent=1 // loop_header
      %s18 = sphi 0, %s22
      %p19 = scmp.ge.s32.totalorder %s18, 6
      %s28 = sphi 0, %s30
      %s31 = sphi 0, %s28
      %s32 = sphi 0, %s31
      %s48 = sphi 0, %s32
      %s54 = sphi 0, %s56
      %s57 = sphi 0, %s54
      %s58 = sphi 0, %s57
      %s74 = sphi 0, %s58
      %s80 = sphi 0, %s82
      %s83 = sphi 0, %s80
      %s84 = sphi 0, %s83
      %s100 = sphi 0, %s84
      %s106 = sphi 0, %s108
      %s109 = sphi 0, %s106
      %s110 = sphi 0, %s109
      %s126 = sphi 0, %s110
    $region4: #{tpu_custom_call.1} parent=1 // loop_header_branch
      %21 = sbr.rel (%p19) target = $region8
    $region5: #{tpu_custom_call.1} parent=1 // loop_body
      %s23 = ssub.s32 %s18, 1
      %s24 = ssub.s32 %s18, 2
      %s25 = sadd.s32 %s18, 1
      %s26 = ssub.s32 %s18, %s25
      %p27 = scmp.eq.s32.totalorder %s26, 0
      %s29 = sadd.s32 %s28, 1
      %s30 = scalar_select %p27, %s28, %s29
      %p33 = pneg %p27
      %p34 = scmp.eq.s32.totalorder %s18, 3
      %p35 = por %p33, %p34
      %p36 = scmp.ne.s32.totalorder %s28, %s31
      %p37 = scmp.eq.s32.totalorder %s18, 0
      %p38 = por %p36, %p37
      %p39 = scmp.ne.s32.totalorder %s28, %s31
      %p40 = scmp.eq.s32.totalorder %s23, 3
      %p41 = por %p39, %p40
      %p42 = scmp.ne.s32.totalorder %s31, %s32
      %p43 = scmp.eq.s32.totalorder %s23, 0
      %p44 = por %p42, %p43
      %p45 = scmp.ne.s32.totalorder %s31, %s32
      %p46 = scmp.eq.s32.totalorder %s24, 3
      %p47 = por %p45, %p46
      %p49 = scmp.ne.s32.totalorder %s32, %s48
      %p50 = scmp.eq.s32.totalorder %s24, 0
      %p51 = por %p49, %p50
      %s52 = ssub.s32 %s18, %s25
      %p53 = scmp.eq.s32.totalorder %s52, 0
      %s55 = sadd.s32 %s54, 1
      %s56 = scalar_select %p53, %s54, %s55
      %p59 = pneg %p53
      %p60 = scmp.eq.s32.totalorder %s18, 3
      %p61 = por %p59, %p60
      %p62 = scmp.ne.s32.totalorder %s54, %s57
      %p63 = scmp.eq.s32.totalorder %s18, 0
      %p64 = por %p62, %p63
      %p65 = scmp.ne.s32.totalorder %s54, %s57
      %p66 = scmp.eq.s32.totalorder %s23, 3
      %p67 = por %p65, %p66
      %p68 = scmp.ne.s32.totalorder %s57, %s58
      %p69 = scmp.eq.s32.totalorder %s23, 0
      %p70 = por %p68, %p69
      %p71 = scmp.ne.s32.totalorder %s57, %s58
      %p72 = scmp.eq.s32.totalorder %s24, 3
      %p73 = por %p71, %p72
      %p75 = scmp.ne.s32.totalorder %s58, %s74
      %p76 = scmp.eq.s32.totalorder %s24, 0
      %p77 = por %p75, %p76
      %s78 = ssub.s32 %s18, %s25
      %p79 = scmp.eq.s32.totalorder %s78, 0
      %s81 = sadd.s32 %s80, 1
      %s82 = scalar_select %p79, %s80, %s81
      %p85 = pneg %p79
      %p86 = scmp.eq.s32.totalorder %s18, 3
      %p87 = por %p85, %p86
      %p88 = scmp.ne.s32.totalorder %s80, %s83
      %p89 = scmp.eq.s32.totalorder %s18, 0
      %p90 = por %p88, %p89
      %p91 = scmp.ne.s32.totalorder %s80, %s83
      %p92 = scmp.eq.s32.totalorder %s23, 3
      %p93 = por %p91, %p92
      %p94 = scmp.ne.s32.totalorder %s83, %s84
      %p95 = scmp.eq.s32.totalorder %s23, 0
      %p96 = por %p94, %p95
      %p97 = scmp.ne.s32.totalorder %s83, %s84
      %p98 = scmp.eq.s32.totalorder %s24, 3
      %p99 = por %p97, %p98
      %p101 = scmp.ne.s32.totalorder %s84, %s100
      %p102 = scmp.eq.s32.totalorder %s24, 0
      %p103 = por %p101, %p102
      %s104 = ssub.s32 %s18, %s25
      %p105 = scmp.eq.s32.totalorder %s104, 0
      %s107 = sadd.s32 %s106, 1
      %s108 = scalar_select %p105, %s106, %s107
      %p111 = pneg %p105
      %p112 = scmp.eq.s32.totalorder %s18, 3
      %p113 = por %p111, %p112
      %p114 = scmp.ne.s32.totalorder %s106, %s109
      %p115 = scmp.eq.s32.totalorder %s18, 0
      %p116 = por %p114, %p115
      %p117 = scmp.ne.s32.totalorder %s106, %s109
      %p118 = scmp.eq.s32.totalorder %s23, 3
      %p119 = por %p117, %p118
      %p120 = scmp.ne.s32.totalorder %s109, %s110
      %p121 = scmp.eq.s32.totalorder %s23, 0
      %p122 = por %p120, %p121
      %p123 = scmp.ne.s32.totalorder %s109, %s110
      %p124 = scmp.eq.s32.totalorder %s24, 3
      %p125 = por %p123, %p124
      %p127 = scmp.ne.s32.totalorder %s110, %s126
      %p128 = scmp.eq.s32.totalorder %s24, 0
      %p129 = por %p127, %p128
      %p130 = scmp.le.s32.totalorder 1, %s18
      %p131 = scmp.lt.s32.totalorder %s18, 5
      %p132 = pnand %p130, %p131
      %p133 = pneg %p132
      // Predicated region
      $region9: #{tpu_custom_call.1} parent=5 // pred_check
        _
      $region10: #{tpu_custom_call.1} parent=5 // pred_check_branch
        %135 = sbr.rel (%p132) target = $region12
      $region11: #{tpu_custom_call.1} parent=5 // pred_region
        %s136 = ssub.s32 %s18, 1
      $region12: #{tpu_custom_call.1} parent=5 // pred_fallthru
        _
      %p137 = scmp.lt.s32.totalorder %s18, 4
      // Predicated region
      $region13: #{tpu_custom_call.1} parent=5 // pred_check
        %p138 = pneg %p137
      $region14: #{tpu_custom_call.1} parent=5 // pred_check_branch
        %140 = sbr.rel (%p138) target = $region16
      $region15: #{tpu_custom_call.1} parent=5 // pred_region
        // Predicated region
        $region17: #{tpu_custom_call.1} parent=15 // pred_check
          %p141 = pneg %p38
        $region18: #{tpu_custom_call.1} parent=15 // pred_check_branch
          %143 = sbr.rel (%p141) target = $region20
        $region19: #{tpu_custom_call.1} parent=15 // pred_region
          %s144 = sand.u32 %s28, 1
          %s145 = scalar_lea.sflag [#allocation3], %s144
          %s146 = sand.u32 %s28, 1
          %s147 = smul.addr %s146, 16
          %s148 = scalar_lea.vmem [#allocation2], %s147
          %s149 = smul.u32 2, %s18
          %s150 = ssub.s32 7, %s149
          %p151 = scmp.lt.s32.totalorder %s150, 2
          %s152 = scalar_select %p151, %s150, 2
          %s153 = smul.u32 8, %s152
          %s154 = ssub.s32 16, %s153
          %s155 = sshll.u32 %s154, 4
          %156 = vsyncadd %s145, %s155
          %p157 = scmp.ne.s32.totalorder 0, %s153
          %s158 = smul.addr %s149, 8
          %s159 = scalar_lea.hbm %s0, %s158
          %s160 = smul.u32 8, %s152
          %s161 = sshll.u32 %s159, 4
          %s162 = int_to_ptr.hbm [resolvable:$true] %s161
          %s163 = sshll.u32 %s148, 4
          %s164 = int_to_ptr.vmem [resolvable:$true] %s163
          %s165 = sshll.u32 %s160, 4
          %169 = dma.hbm_to_vmem [thread:$0]  (%p157), %s162, %s165, %s164, %s145, 128, 128, 8
        $region20: #{tpu_custom_call.1} parent=15 // pred_fallthru
          _
        // Predicated region
        $region21: #{tpu_custom_call.1} parent=15 // pred_check
          %p170 = pneg %p64
        $region22: #{tpu_custom_call.1} parent=15 // pred_check_branch
          %172 = sbr.rel (%p170) target = $region24
        $region23: #{tpu_custom_call.1} parent=15 // pred_region
          %s173 = sand.u32 %s18, 1
          %s174 = scalar_lea.sflag [#allocation6], %s173
          %s175 = sand.u32 %s54, 1
          %s176 = smul.addr %s175, 16
          %s177 = scalar_lea.vmem [#allocation5], %s176
          %s178 = smul.u32 2, %s18
          %s179 = ssub.s32 7, %s178
          %p180 = scmp.lt.s32.totalorder %s179, 2
          %s181 = scalar_select %p180, %s179, 2
          %s182 = smul.u32 8, %s181
          %s183 = ssub.s32 16, %s182
          %s184 = sshll.u32 %s183, 4
          %185 = vsyncadd %s174, %s184
          %p186 = scmp.ne.s32.totalorder 0, %s182
          %s187 = smul.addr %s178, 8
          %s188 = scalar_lea.hbm %s1, %s187
          %s189 = smul.u32 8, %s181
          %s190 = sshll.u32 %s188, 4
          %s191 = int_to_ptr.hbm [resolvable:$true] %s190
          %s192 = sshll.u32 %s177, 4
          %s193 = int_to_ptr.vmem [resolvable:$true] %s192
          %s194 = sshll.u32 %s189, 4
          %198 = dma.hbm_to_vmem [thread:$0]  (%p186), %s191, %s194, %s193, %s174, 128, 128, 8
        $region24: #{tpu_custom_call.1} parent=15 // pred_fallthru
          _
        // Predicated region
        $region25: #{tpu_custom_call.1} parent=15 // pred_check
          %p199 = pneg %p90
        $region26: #{tpu_custom_call.1} parent=15 // pred_check_branch
          %201 = sbr.rel (%p199) target = $region28
        $region27: #{tpu_custom_call.1} parent=15 // pred_region
          %s202 = sand.u32 %s18, 1
          %s203 = scalar_lea.sflag [#allocation6], %s202
          %s204 = sand.u32 %s80, 1
          %s205 = smul.addr %s204, 16
          %s206 = scalar_lea.vmem [#allocation7], %s205
          %s207 = smul.u32 2, %s18
          %s208 = ssub.s32 7, %s207
          %p209 = scmp.lt.s32.totalorder %s208, 2
          %s210 = scalar_select %p209, %s208, 2
          %s211 = smul.u32 8, %s210
          %s212 = ssub.s32 16, %s211
          %s213 = sshll.u32 %s212, 4
          %214 = vsyncadd %s203, %s213
          %p215 = scmp.ne.s32.totalorder 0, %s211
          %s216 = smul.addr %s207, 8
          %s217 = scalar_lea.hbm %s2, %s216
          %s218 = smul.u32 8, %s210
          %s219 = sshll.u32 %s217, 4
          %s220 = int_to_ptr.hbm [resolvable:$true] %s219
          %s221 = sshll.u32 %s206, 4
          %s222 = int_to_ptr.vmem [resolvable:$true] %s221
          %s223 = sshll.u32 %s218, 4
          %227 = dma.hbm_to_vmem [thread:$0]  (%p215), %s220, %s223, %s222, %s203, 128, 128, 8
        $region28: #{tpu_custom_call.1} parent=15 // pred_fallthru
          _
      $region16: #{tpu_custom_call.1} parent=5 // pred_fallthru
        _
      %p228 = scmp.le.s32.totalorder 1, %s18
      %p229 = scmp.lt.s32.totalorder %s18, 5
      %p230 = pnand %p228, %p229
      %p231 = pneg %p230
      // Predicated region
      $region29: #{tpu_custom_call.1} parent=5 // pred_check
        _
      $region30: #{tpu_custom_call.1} parent=5 // pred_check_branch
        %233 = sbr.rel (%p230) target = $region32
      $region31: #{tpu_custom_call.1} parent=5 // pred_region
        %s234 = ssub.s32 %s18, 1
        %s235 = sand.u32 %s31, 1
        %s236 = scalar_lea.sflag [#allocation3], %s235
        %s237 = sand.u32 %s31, 1
        %s238 = smul.addr %s237, 16
        %s239 = scalar_lea.vmem [#allocation2], %s238
        // Predicated region
        $region33: #{tpu_custom_call.1} parent=31 // pred_check
          %p240 = pneg %p44
        $region34: #{tpu_custom_call.1} parent=31 // pred_check_branch
          %242 = sbr.rel (%p240) target = $region36
        $region35: #{tpu_custom_call.1} parent=31 // pred_region
          %244 = dma.done %s236, 256
        $region36: #{tpu_custom_call.1} parent=31 // pred_fallthru
          _
        %s245 = sand.u32 %s23, 1
        %s246 = scalar_lea.sflag [#allocation6], %s245
        %s247 = sand.u32 %s57, 1
        %s248 = smul.addr %s247, 16
        %s249 = scalar_lea.vmem [#allocation5], %s248
        // Predicated region
        $region37: #{tpu_custom_call.1} parent=31 // pred_check
          %p250 = pneg %p70
        $region38: #{tpu_custom_call.1} parent=31 // pred_check_branch
          %252 = sbr.rel (%p250) target = $region40
        $region39: #{tpu_custom_call.1} parent=31 // pred_region
          %254 = dma.done %s246, 256
        $region40: #{tpu_custom_call.1} parent=31 // pred_fallthru
          _
        %s255 = sand.u32 %s23, 1
        %s256 = scalar_lea.sflag [#allocation6], %s255
        %s257 = sand.u32 %s83, 1
        %s258 = smul.addr %s257, 16
        %s259 = scalar_lea.vmem [#allocation7], %s258
        // Predicated region
        $region41: #{tpu_custom_call.1} parent=31 // pred_check
          %p260 = pneg %p96
        $region42: #{tpu_custom_call.1} parent=31 // pred_check_branch
          %262 = sbr.rel (%p260) target = $region44
        $region43: #{tpu_custom_call.1} parent=31 // pred_region
          %264 = dma.done %s256, 256
        $region44: #{tpu_custom_call.1} parent=31 // pred_fallthru
          _
        %s265 = sand.u32 %s31, 1
        %s266 = scalar_lea.sflag [#allocation3], %s265
        %s267 = sand.u32 %s31, 1
        %s268 = smul.addr %s267, 16
        %s269 = scalar_lea.vmem [#allocation2], %s268
        %p270 = pneg %p44
        %p271 = pneg %p41
        %s272 = sand.u32 %s23, 1
        %s273 = scalar_lea.sflag [#allocation6], %s272
        %s274 = sand.u32 %s57, 1
        %s275 = smul.addr %s274, 16
        %s276 = scalar_lea.vmem [#allocation5], %s275
        %p277 = pneg %p70
        %p278 = pneg %p67
        %s279 = sand.u32 %s23, 1
        %s280 = scalar_lea.sflag [#allocation6], %s279
        %s281 = sand.u32 %s83, 1
        %s282 = smul.addr %s281, 16
        %s283 = scalar_lea.vmem [#allocation7], %s282
        %p284 = pneg %p96
        %p285 = pneg %p93
        %p286 = pneg %p122
        %p287 = pneg %p119
        %s288 = sand.u32 %s109, 1
        %s289 = scalar_lea.sflag [#allocation4], %s288
        %s290 = sand.u32 %s109, 1
        %s291 = smul.addr %s290, 8
        %s292 = scalar_lea.vmem [#allocation8], %s291
        %s293 = smul.u32 2, %s23
        %s294 = ssub.s32 7, %s293
        %p295 = scmp.lt.s32.totalorder %s294, 2
        %s296 = scalar_select %p295, %s294, 2
        %s297 = smul.u32 8, %s296
        %s298 = smul.u32 2, %s23
        %s299 = ssub.s32 7, %s298
        %p300 = scmp.lt.s32.totalorder %s299, 2
        %s301 = scalar_select %p300, %s299, 2
        %s302 = smul.u32 8, %s301
        %s303 = smul.u32 2, %s23
        %s304 = ssub.s32 7, %s303
        %p305 = scmp.lt.s32.totalorder %s304, 2
        %s306 = scalar_select %p305, %s304, 2
        %s307 = smul.u32 8, %s306
        %p308 = scmp.eq.s32.totalorder %s23, 3
        %p309 = scmp.ne.s32.totalorder %s23, 3
        // Predicated region
        $region45: #{tpu_custom_call.1} parent=31 // pred_check
          %p310 = pneg %p309
        $region46: #{tpu_custom_call.1} parent=31 // pred_check_branch
          %312 = sbr.rel (%p310) target = $region48
        $region47: #{tpu_custom_call.1} parent=31 // pred_region
          %v313 = vld [vmem:[%s239] sm:$0xff]
          %v314 = vld [vmem:[%s239 + $0x8] sm:$0xff]
          %v315 = vld [vmem:[%s249] sm:$0xff]
          %v316 = vld [vmem:[%s249 + $0x8] sm:$0xff]
          %v317 = vld [vmem:[%s259] sm:$0xff]
          %v318 = vld [vmem:[%s259 + $0x8] sm:$0xff]
          %v319 = vsub.f32 %v317, %v313
          %v320 = vsub.f32 %v318, %v314
          %v321 = vrcp.pop %v315
          %v322 = vmul.f32 %v315, %v321
          %v323 = vsub.f32 1.0, %v322
          %v324 = vmul.f32 %v321, %v323
          %v325 = vadd.f32 %v321, %v324
          %vm326 = vweird.f32 %v315
          %vm327 = vweird.f32 %v321
          %vm328 = vmor %vm326, %vm327
          %v329 = vsel %vm328, %v321, %v325
          %v330 = vand.u32 2147483647, %v315
          %vm331 = vcmp.eq.f32.partialorder %v330, 8.507059e+37
          %v332 = vand.u32 %v315, 2147483648
          %v333 = vor.u32 1.1754944e-38, %v332
          %v334 = vsel %vm331, %v333, %v329
          %v335 = vmul.f32 %v319, %v334
          %v336 = vrcp.pop %v316
          %v337 = vmul.f32 %v316, %v336
          %v338 = vsub.f32 1.0, %v337
          %v339 = vmul.f32 %v336, %v338
          %v340 = vadd.f32 %v336, %v339
          %vm341 = vweird.f32 %v316
          %vm342 = vweird.f32 %v336
          %vm343 = vmor %vm341, %vm342
          %v344 = vsel %vm343, %v336, %v340
          %v345 = vand.u32 2147483647, %v316
          %vm346 = vcmp.eq.f32.partialorder %v345, 8.507059e+37
          %v347 = vand.u32 %v316, 2147483648
          %v348 = vor.u32 1.1754944e-38, %v347
          %v349 = vsel %vm346, %v348, %v344
          %v350 = vmul.f32 %v320, %v349
          %v351 = vmul.f32 %v335, %v335
          %v352 = vmul.f32 %v350, %v350
          %v353 = vmul.f32 %v351, 0.5
          %v354 = vmul.f32 %v352, 0.5
          %v355 = vlog2.pop %v315
          %v356 = vmul.f32 %v355, 0.6931472
          %v357 = vlog2.pop %v316
          %v358 = vmul.f32 %v357, 0.6931472
          %v359 = vadd.f32 %v353, %v356
          %v360 = vadd.f32 %v354, %v358
          %v361 = vadd.f32 %v359, %v360
          %v362 = vadd.f32 %v361, 0.0
          %363 = vst [vmem:[%s292] sm:$0xff] %v362
        $region48: #{tpu_custom_call.1} parent=31 // pred_fallthru
          _
        // Predicated region
        $region49: #{tpu_custom_call.1} parent=31 // pred_check
          %p364 = pneg %p308
        $region50: #{tpu_custom_call.1} parent=31 // pred_check_branch
          %366 = sbr.rel (%p364) target = $region52
        $region51: #{tpu_custom_call.1} parent=31 // pred_region
          %v367 = vld [vmem:[%s239] sm:$0xff]
          %v368 = vld [vmem:[%s239 + $0x8] sm:$0xff]
          %v369 = vld [vmem:[%s249] sm:$0xff]
          %v370 = vld [vmem:[%s249 + $0x8] sm:$0xff]
          %v371 = vld [vmem:[%s259] sm:$0xff]
          %v372 = vld [vmem:[%s259 + $0x8] sm:$0xff]
          %v373 = vsub.f32 %v371, %v367
          %v374 = vsub.f32 %v372, %v368
          %v375 = vrcp.pop %v369
          %v376 = vmul.f32 %v369, %v375
          %v377 = vsub.f32 1.0, %v376
          %v378 = vmul.f32 %v375, %v377
          %v379 = vadd.f32 %v375, %v378
          %vm380 = vweird.f32 %v369
          %vm381 = vweird.f32 %v375
          %vm382 = vmor %vm380, %vm381
          %v383 = vsel %vm382, %v375, %v379
          %v384 = vand.u32 2147483647, %v369
          %vm385 = vcmp.eq.f32.partialorder %v384, 8.507059e+37
          %v386 = vand.u32 %v369, 2147483648
          %v387 = vor.u32 1.1754944e-38, %v386
          %v388 = vsel %vm385, %v387, %v383
          %v389 = vmul.f32 %v373, %v388
          %v390 = vrcp.pop %v370
          %v391 = vmul.f32 %v370, %v390
          %v392 = vsub.f32 1.0, %v391
          %v393 = vmul.f32 %v390, %v392
          %v394 = vadd.f32 %v390, %v393
          %vm395 = vweird.f32 %v370
          %vm396 = vweird.f32 %v390
          %vm397 = vmor %vm395, %vm396
          %v398 = vsel %vm397, %v390, %v394
          %v399 = vand.u32 2147483647, %v370
          %vm400 = vcmp.eq.f32.partialorder %v399, 8.507059e+37
          %v401 = vand.u32 %v370, 2147483648
          %v402 = vor.u32 1.1754944e-38, %v401
          %v403 = vsel %vm400, %v402, %v398
          %v404 = vmul.f32 %v374, %v403
          %v405 = vmul.f32 %v389, %v389
          %v406 = vmul.f32 %v404, %v404
          %v407 = vmul.f32 %v405, 0.5
          %v408 = vmul.f32 %v406, 0.5
          %v409 = vlog2.pop %v369
          %v410 = vmul.f32 %v409, 0.6931472
          %v411 = vlog2.pop %v370
          %v412 = vmul.f32 %v411, 0.6931472
          %v413 = vadd.f32 %v407, %v410
          %v414 = vadd.f32 %v408, %v412
          %v415 = vlaneseq
          %v416 = vshrl.u32 %v415, 7
          %v417 = vadd.s32 %v416, 8
          %vm418 = vcmp.lt.s32.totalorder %v416, 1
          %vm419 = vcmp.lt.s32.totalorder %v417, 1
          %v420 = vsel %vm418, %v413, 0.0
          %v421 = vsel %vm419, %v414, 0.0
          %v422 = vadd.f32 %v420, %v421
          %v423 = vadd.f32 %v422, 0.0
          %424 = vst [vmem:[%s292] sm:$0xff] %v423
        $region52: #{tpu_custom_call.1} parent=31 // pred_fallthru
          _
        %s425 = sand.u32 %s109, 1
        %s426 = scalar_lea.sflag [#allocation4], %s425
        %s427 = sand.u32 %s109, 1
        %s428 = smul.addr %s427, 8
        %s429 = scalar_lea.vmem [#allocation8], %s428
        // Predicated region
        $region53: #{tpu_custom_call.1} parent=31 // pred_check
          %p430 = pneg %p119
        $region54: #{tpu_custom_call.1} parent=31 // pred_check_branch
          %432 = sbr.rel (%p430) target = $region56
        $region55: #{tpu_custom_call.1} parent=31 // pred_region
          %434 = vsyncadd %s426, 0
          %s435 = smul.addr %s23, 8
          %s436 = scalar_lea.hbm %s3, %s435
          %s438 = sshll.u32 %s429, 4
          %s439 = int_to_ptr.vmem [resolvable:$true] %s438
          %s440 = sshll.u32 %s436, 4
          %s441 = int_to_ptr.hbm [resolvable:$true] %s440
          %443 = dma.vmem_to_hbm [thread:$0]  %s439, 128, %s441, %s426
        $region56: #{tpu_custom_call.1} parent=31 // pred_fallthru
          _
      $region32: #{tpu_custom_call.1} parent=5 // pred_fallthru
        _
      %p444 = scmp.le.s32.totalorder 2, %s18
      // Predicated region
      $region57: #{tpu_custom_call.1} parent=5 // pred_check
        %p445 = pneg %p444
      $region58: #{tpu_custom_call.1} parent=5 // pred_check_branch
        %447 = sbr.rel (%p445) target = $region60
      $region59: #{tpu_custom_call.1} parent=5 // pred_region
        %s448 = ssub.s32 %s18, 2
        // Predicated region
        $region61: #{tpu_custom_call.1} parent=59 // pred_check
          %p449 = pneg %p125
        $region62: #{tpu_custom_call.1} parent=59 // pred_check_branch
          %451 = sbr.rel (%p449) target = $region64
        $region63: #{tpu_custom_call.1} parent=59 // pred_region
          %s452 = sand.u32 %s110, 1
          %s453 = scalar_lea.sflag [#allocation4], %s452
          %s454 = sand.u32 %s110, 1
          %s455 = smul.addr %s454, 8
          %s456 = scalar_lea.vmem [#allocation8], %s455
          %458 = dma.done %s453, 128
        $region64: #{tpu_custom_call.1} parent=59 // pred_fallthru
          _
      $region60: #{tpu_custom_call.1} parent=5 // pred_fallthru
        _
    $region6: #{tpu_custom_call.1} parent=1 // loop_footer
      %s22 = sadd.s32 1, %s18
    $region7: #{tpu_custom_call.1} parent=1 // loop_footer_branch
      %17 = sbr.rel target = $region3
    $region8: #{tpu_custom_call.1} parent=1 // loop_exit
      _
    %459 = vsyncpa [#allocation3], 1
    %s460 = scalar_lea.sflag [#allocation3], 1
    %461 = vsyncpa %s460, 1
    %462 = vsyncpa [#allocation6], 1
    %s463 = scalar_lea.sflag [#allocation6], 1
    %464 = vsyncpa %s463, 1
    %465 = vsyncpa [#allocation4], 1
    %s466 = scalar_lea.sflag [#allocation4], 1
    %467 = vsyncpa %s466, 1

</llo_original>
